<compile_context>
chip_gen: v6e
topology: v6e:2x2x1
jax: 0.10.0
libtpu: 0.0.40
codegen_flags: <defaults>
</compile_context>

<pallas_src>
import jax
import jax.numpy as jnp
from jax.experimental import pallas as pl
from jax.experimental.pallas import tpu as pltpu

# ---- module "config" (cfg of SpecAugment; defaults of 0 regions would be a
# no-op, so use 2/2 to actually exercise the forward path) ----
CUTOUT_X_REGIONS = 2
CUTOUT_Y_REGIONS = 2
CUTOUT_X_WIDTH = 10
CUTOUT_Y_WIDTH = 10
_N_REGIONS = CUTOUT_X_REGIONS + CUTOUT_Y_REGIONS

_MAX_B_BLK = 8                 # batches handled per grid step
_TILE_BUDGET_BYTES = 2 << 20   # streaming path: 512-lane tiles already reach
                               # ~85% of HBM roofline, so stay small enough to
                               # double-buffer 2 arrays everywhere (8 MiB
                               # working set << 16 MiB v5e scoped default).


# --------------------------------------------------------------------------
# Primary: in-place stripe-only zero writes (no full-tensor read or rewrite).
# --------------------------------------------------------------------------
def _make_inplace_kernel(b_blk):
    def kernel(starts_ref, x_hbm, o_hbm, zx_ref, zy_ref, sems):
        """starts_ref: SMEM (B, _N_REGIONS) int32 stripe starts.
        x_hbm / o_hbm: full (B, F, T) HBM refs (aliased; x is never read).
        zx_ref: VMEM (CUTOUT_X_WIDTH, T) zeros -> X-stripe DMA source.
        zy_ref: VMEM (F, CUTOUT_Y_WIDTH) zeros -> Y-stripe DMA source.
        sems:   DMA semaphores, one per (local batch, region)."""
        del x_hbm  # aliased to o_hbm; untouched data stays in place
        b0 = pl.program_id(0) * b_blk
        # Re-zero the tiny stripe sources every step: trivially cheap, and
        # safe when the batch grid axis is split across TensorCores (each
        # core owns its own scratch and may never execute step 0).
        zx_ref[...] = jnp.zeros_like(zx_ref)
        zy_ref[...] = jnp.zeros_like(zy_ref)

        copies = []
        for lb in range(b_blk):                       # static unroll (<= 8)
            b = b0 + lb                               # global batch index
            for r in range(CUTOUT_X_REGIONS):
                s = starts_ref[b, r]
                cp = pltpu.make_async_copy(
                    zx_ref,
                    o_hbm.at[b, pl.ds(s, CUTOUT_X_WIDTH), :],
                    sems.at[lb, r])
                cp.start()
                copies.append(cp)
            for r in range(CUTOUT_Y_REGIONS):
                s = starts_ref[b, CUTOUT_X_REGIONS + r]
                cp = pltpu.make_async_copy(
                    zy_ref,
                    o_hbm.at[b, :, pl.ds(s, CUTOUT_Y_WIDTH)],
                    sems.at[lb, CUTOUT_X_REGIONS + r])
                cp.start()
                copies.append(cp)
        # All stripe writes for this step are in flight; drain them.
        for cp in copies:
            cp.wait()
    return kernel


def _choose_batch_block(B, max_blk=_MAX_B_BLK):
    """Largest batch-block that still leaves >= 2 grid steps (v7x megacore)."""
    if B <= 1:
        return 1
    cap = min(max_blk, B // 2)
    for b in range(cap, 0, -1):
        if B % b == 0:
            return b
    return 1


def _spec_augment_inplace(x, starts):
    B, F, T = x.shape
    b_blk = _choose_batch_block(B)
    grid_spec = pltpu.PrefetchScalarGridSpec(
        num_scalar_prefetch=1,
        grid=(B // b_blk,),
        in_specs=[pl.BlockSpec(memory_space=pl.ANY)],   # raw HBM, no auto-DMA
        out_specs=pl.BlockSpec(memory_space=pl.ANY),
        scratch_shapes=[
            pltpu.VMEM((CUTOUT_X_WIDTH, T), x.dtype),
            pltpu.VMEM((F, CUTOUT_Y_WIDTH), x.dtype),
            pltpu.SemaphoreType.DMA((b_blk, _N_REGIONS)),
        ],
    )
    return pl.pallas_call(
        _make_inplace_kernel(b_blk),
        out_shape=jax.ShapeDtypeStruct((B, F, T), x.dtype),
        grid_spec=grid_spec,
        # Operand indices include the scalar-prefetch arg: (starts, x) -> x is 1.
        input_output_aliases={1: 0},
        compiler_params=pltpu.CompilerParams(
            dimension_semantics=("parallel",)),
    )(starts, x)


# --------------------------------------------------------------------------
# Fallback: streaming read+mask+write (previously validated kernel).
# --------------------------------------------------------------------------
def _stripe_mask(idx, starts_ref, b, col0, n_regions, width):
    """OR of `n_regions` half-open ranges [start, start+width) over `idx`.
    Unsigned-range trick: (idx - s).uint32 < width  <=>  s <= idx < s + width
    (starts are clamped to be non-negative in the wrapper)."""
    w = jnp.uint32(width)
    m = (idx - starts_ref[b, col0]).astype(jnp.uint32) < w
    for r in range(1, n_regions):
        m |= (idx - starts_ref[b, col0 + r]).astype(jnp.uint32) < w
    return m


def _stream_kernel(starts_ref, x_ref, o_ref):
    """starts_ref: SMEM (B, _N_REGIONS) int32; x_ref/o_ref: (B_blk,F,T_blk)."""
    bi = pl.program_id(0)          # batch-block index
    tj = pl.program_id(1)          # time-block index
    B_blk, F, T_blk = x_ref.shape
    t0 = tj * T_blk                # global time offset of this block

    f_idx = jax.lax.broadcasted_iota(jnp.int32, (F, 1), 0)
    t_idx = jax.lax.broadcasted_iota(jnp.int32, (1, T_blk), 1) + t0

    for lb in range(B_blk):        # static unroll (B_blk <= _MAX_B_BLK)
        b = bi * B_blk + lb
        f_mask = _stripe_mask(f_idx, starts_ref, b, 0,
                              CUTOUT_X_REGIONS, CUTOUT_X_WIDTH)
        t_mask = _stripe_mask(t_idx, starts_ref, b, CUTOUT_X_REGIONS,
                              CUTOUT_Y_REGIONS, CUTOUT_Y_WIDTH)
        o_ref[lb] = jnp.where(f_mask | t_mask, 0.0, x_ref[lb])


def _choose_blocks(B, F, T, itemsize, budget=_TILE_BUDGET_BYTES):
    """Lane-dense T blocks, largest batch divisor fitting the budget, and
    never collapse the grid to a single step when it can be split."""
    t_cands = {T} | {t for t in range(128, T + 1, 128) if T % t == 0}
    T_blk = min(t_cands)
    for t in sorted(t_cands, reverse=True):
        if F * t * itemsize <= budget:
            T_blk = t
            break
    B_blk = 1
    for b in range(min(B, _MAX_B_BLK), 0, -1):
        if B % b == 0 and b * F * T_blk * itemsize <= budget:
            B_blk = b
            break
    if B // B_blk == 1 and T // T_blk == 1:
        if B >= 2:                                  # prefer splitting batch
            for b in range(B_blk // 2, 0, -1):
                if B % b == 0:
                    B_blk = b
                    break
        elif T_blk % 256 == 0:                      # else split time
            T_blk //= 2
    return B_blk, T_blk


def _spec_augment_streaming(x, starts):
    B, F, T = x.shape
    B_blk, T_blk = _choose_blocks(B, F, T, x.dtype.itemsize)
    grid = (B // B_blk, T // T_blk)

    # 2 arrays x 2 pipeline buffers per tile; if an unsplittable (F, T) forces
    # a tile past the conservative budget, raise the scoped-VMEM limit.
    working_set = 4 * B_blk * F * T_blk * x.dtype.itemsize
    extra = {}
    if working_set + (4 << 20) > (16 << 20):
        extra["vmem_limit_bytes"] = min(working_set + (4 << 20), 48 << 20)

    grid_spec = pltpu.PrefetchScalarGridSpec(
        num_scalar_prefetch=1,
        grid=grid,
        in_specs=[pl.BlockSpec((B_blk, F, T_blk),
                               lambda bi, tj, s_ref: (bi, 0, tj))],
        out_specs=pl.BlockSpec((B_blk, F, T_blk),
                               lambda bi, tj, s_ref: (bi, 0, tj)),
    )
    return pl.pallas_call(
        _stream_kernel,
        out_shape=jax.ShapeDtypeStruct((B, F, T), x.dtype),
        grid_spec=grid_spec,
        compiler_params=pltpu.CompilerParams(
            dimension_semantics=("parallel", "parallel"), **extra),
    )(starts, x)


# --------------------------------------------------------------------------
# Public entry point.
# --------------------------------------------------------------------------
def spec_augment(x, starts):
    """x: (B, F, T) spectrogram; starts: (B, _N_REGIONS) int32 stripe starts."""
    B, F, T = x.shape
    if _N_REGIONS == 0:
        return x
    # Clamp starts to valid in-bounds stripe positions: protects the
    # unsigned-range mask trick and keeps the in-place stripe DMAs in bounds.
    hi = jnp.array([max(F - CUTOUT_X_WIDTH, 0)] * CUTOUT_X_REGIONS
                   + [max(T - CUTOUT_Y_WIDTH, 0)] * CUTOUT_Y_REGIONS,
                   dtype=jnp.int32)
    starts = jnp.clip(starts.astype(jnp.int32), 0, hi)

    if CUTOUT_X_WIDTH > F or CUTOUT_Y_WIDTH > T:
        return _spec_augment_streaming(x, starts)   # degenerate stripe sizes

    try:
        out = _spec_augment_inplace(x, starts)
        return jax.block_until_ready(out)           # surface compile errors here
    except Exception:
        # TODO(synk): remove this safety net once the narrow stripe-DMA path
        # (dynamic column offsets on the HBM ref) is validated across Mosaic
        # releases in CI; the streaming kernel is the conservative fallback.
        return _spec_augment_streaming(x, starts)


# --------------------------------------------------------------------------
# Helpers for the test harness.
# --------------------------------------------------------------------------
def sample_params(key, B, F, T):
    """Deterministic stand-in for `int(random.uniform(0, hi))` per batch/region.
    Returns one merged (B, _N_REGIONS) int32 array of stripe starts (>= 0)."""
    kx, ky = jax.random.split(key)
    xs = jnp.floor(jax.random.uniform(
        kx, (B, CUTOUT_X_REGIONS), minval=0.0,
        maxval=float(max(F - CUTOUT_X_WIDTH, 1)))).astype(jnp.int32)
    ys = jnp.floor(jax.random.uniform(
        ky, (B, CUTOUT_Y_REGIONS), minval=0.0,
        maxval=float(max(T - CUTOUT_Y_WIDTH, 1)))).astype(jnp.int32)
    starts = jnp.concatenate([xs, ys], axis=1)
    hi = jnp.array([max(F - CUTOUT_X_WIDTH, 0)] * CUTOUT_X_REGIONS
                   + [max(T - CUTOUT_Y_WIDTH, 0)] * CUTOUT_Y_REGIONS,
                   dtype=jnp.int32)
    return jnp.clip(starts, 0, hi)


def reference(x, starts):
    """Pure-JAX reference mirroring the torch loops."""
    B, F, T = x.shape
    f_idx = jnp.arange(F, dtype=jnp.int32)[None, :, None]
    t_idx = jnp.arange(T, dtype=jnp.int32)[None, None, :]
    mask = jnp.zeros((B, F, T), dtype=bool)
    for r in range(CUTOUT_X_REGIONS):
        s = starts[:, r][:, None, None]
        mask |= (f_idx >= s) & (f_idx < s + CUTOUT_X_WIDTH)
    for r in range(CUTOUT_Y_REGIONS):
        s = starts[:, CUTOUT_X_REGIONS + r][:, None, None]
        mask |= (t_idx >= s) & (t_idx < s + CUTOUT_Y_WIDTH)
    return jnp.where(mask, 0.0, x).astype(x.dtype)


if __name__ == "__main__":
    key = jax.random.PRNGKey(0)
    k_x, k_p = jax.random.split(key)

    B, F, T = 2, 64, 128  # (batch, freq, time)
    x = jax.random.normal(k_x, (B, F, T), dtype=jnp.float32)
    starts = sample_params(k_p, B, F, T)

    # Compute the reference before the (possibly in-place / aliased) kernel.
    ref = jax.block_until_ready(reference(x, starts))

    out = spec_augment(x, starts)
    out = jax.block_until_ready(out)

    assert out.shape == x.shape and out.dtype == x.dtype
    assert jnp.allclose(out, ref), "mismatch vs reference"

    print("KERNEL_OK")
</pallas_src>

<mosaic_0001>
module attributes {stable_mosaic.version = 11 : i64} {
  func.func @kernel(%arg0: i32, %arg1: memref<2x4xi32, #tpu.memory_space<smem>>, %arg2: memref<2x64x128xf32, #tpu.memory_space<any>>, %arg3: memref<2x64x128xf32, #tpu.memory_space<any>>, %arg4: memref<10x128xf32, #tpu.memory_space<vmem>>, %arg5: memref<64x10xf32, #tpu.memory_space<vmem>>, %arg6: memref<1x4x!tpu.dma_semaphore, #tpu.memory_space<semaphore_mem>>) attributes {dimension_semantics = [#tpu.dimension_semantics<parallel>], iteration_bounds = array<i64: 2>, scalar_prefetch = 1 : i64, scratch_operands = 3 : i64, tpu.core_type = #tpu.core_type<tc>, window_params = [{}, {}]} {
    %c1_i32 = arith.constant 1 : i32
    %0 = arith.muli %arg0, %c1_i32 : i32
    %cst = arith.constant 0.000000e+00 : f32
    %1 = vector.broadcast %cst : f32 to vector<10x128xf32>
    %c0 = arith.constant 0 : index
    %c0_0 = arith.constant 0 : index
    %2 = vector.load %arg4[%c0, %c0_0] : memref<10x128xf32, #tpu.memory_space<vmem>>, vector<10x128xf32>
    tpu.vector_store %arg4[%c0, %c0_0], %1 {strides = array<i32>} : memref<10x128xf32, #tpu.memory_space<vmem>>, vector<10x128xf32>,
    %cst_1 = arith.constant 0.000000e+00 : f32
    %3 = vector.broadcast %cst_1 : f32 to vector<64x10xf32>
    %c0_2 = arith.constant 0 : index
    %c0_3 = arith.constant 0 : index
    %4 = vector.load %arg5[%c0_2, %c0_3] : memref<64x10xf32, #tpu.memory_space<vmem>>, vector<64x10xf32>
    tpu.vector_store %arg5[%c0_2, %c0_3], %3 {strides = array<i32>} : memref<64x10xf32, #tpu.memory_space<vmem>>, vector<64x10xf32>,
    %c0_i32 = arith.constant 0 : i32
    %5 = arith.addi %0, %c0_i32 : i32
    %6 = arith.index_cast %5 : i32 to index
    %c0_4 = arith.constant 0 : index
    %7 = memref.load %arg1[%6, %c0_4] : memref<2x4xi32, #tpu.memory_space<smem>>
    %c0_i32_5 = arith.constant 0 : i32
    %c0_i32_6 = arith.constant 0 : i32
    %c0_i32_7 = arith.constant 0 : i32
    %8 = tpu.memref_slice %arg3[%5, %7, %c0_i32_7] : memref<2x64x128xf32, #tpu.memory_space<any>> -> memref<1x10x128xf32, #tpu.memory_space<any>>
    %9 = tpu.memref_squeeze %8 : memref<1x10x128xf32, #tpu.memory_space<any>> -> memref<10x128xf32, #tpu.memory_space<any>>
    %10 = tpu.memref_slice %arg6[%c0_i32_5, %c0_i32_6] : memref<1x4x!tpu.dma_semaphore, #tpu.memory_space<semaphore_mem>> -> memref<1x1x!tpu.dma_semaphore, #tpu.memory_space<semaphore_mem>>
    %11 = tpu.memref_squeeze %10 : memref<1x1x!tpu.dma_semaphore, #tpu.memory_space<semaphore_mem>> -> memref<!tpu.dma_semaphore, #tpu.memory_space<semaphore_mem>>
    tpu.enqueue_dma source(%arg4 : memref<10x128xf32, #tpu.memory_space<vmem>>) target(%9 : memref<10x128xf32, #tpu.memory_space<any>>) target_semaphore(%11 : memref<!tpu.dma_semaphore, #tpu.memory_space<semaphore_mem>>)
    %12 = arith.index_cast %5 : i32 to index
    %c1 = arith.constant 1 : index
    %13 = memref.load %arg1[%12, %c1] : memref<2x4xi32, #tpu.memory_space<smem>>
    %c0_i32_8 = arith.constant 0 : i32
    %c1_i32_9 = arith.constant 1 : i32
    %c0_i32_10 = arith.constant 0 : i32
    %14 = tpu.memref_slice %arg3[%5, %13, %c0_i32_10] : memref<2x64x128xf32, #tpu.memory_space<any>> -> memref<1x10x128xf32, #tpu.memory_space<any>>
    %15 = tpu.memref_squeeze %14 : memref<1x10x128xf32, #tpu.memory_space<any>> -> memref<10x128xf32, #tpu.memory_space<any>>
    %16 = tpu.memref_slice %arg6[%c0_i32_8, %c1_i32_9] : memref<1x4x!tpu.dma_semaphore, #tpu.memory_space<semaphore_mem>> -> memref<1x1x!tpu.dma_semaphore, #tpu.memory_space<semaphore_mem>>
    %17 = tpu.memref_squeeze %16 : memref<1x1x!tpu.dma_semaphore, #tpu.memory_space<semaphore_mem>> -> memref<!tpu.dma_semaphore, #tpu.memory_space<semaphore_mem>>
    tpu.enqueue_dma source(%arg4 : memref<10x128xf32, #tpu.memory_space<vmem>>) target(%15 : memref<10x128xf32, #tpu.memory_space<any>>) target_semaphore(%17 : memref<!tpu.dma_semaphore, #tpu.memory_space<semaphore_mem>>)
    %18 = arith.index_cast %5 : i32 to index
    %c2 = arith.constant 2 : index
    %19 = memref.load %arg1[%18, %c2] : memref<2x4xi32, #tpu.memory_space<smem>>
    %c0_i32_11 = arith.constant 0 : i32
    %c2_i32 = arith.constant 2 : i32
    %c0_i32_12 = arith.constant 0 : i32
    %20 = tpu.memref_slice %arg3[%5, %c0_i32_12, %19] : memref<2x64x128xf32, #tpu.memory_space<any>> -> memref<1x64x10xf32, #tpu.memory_space<any>>
    %21 = tpu.memref_squeeze %20 : memref<1x64x10xf32, #tpu.memory_space<any>> -> memref<64x10xf32, #tpu.memory_space<any>>
    %22 = tpu.memref_slice %arg6[%c0_i32_11, %c2_i32] : memref<1x4x!tpu.dma_semaphore, #tpu.memory_space<semaphore_mem>> -> memref<1x1x!tpu.dma_semaphore, #tpu.memory_space<semaphore_mem>>
    %23 = tpu.memref_squeeze %22 : memref<1x1x!tpu.dma_semaphore, #tpu.memory_space<semaphore_mem>> -> memref<!tpu.dma_semaphore, #tpu.memory_space<semaphore_mem>>
    tpu.enqueue_dma source(%arg5 : memref<64x10xf32, #tpu.memory_space<vmem>>) target(%21 : memref<64x10xf32, #tpu.memory_space<any>>) target_semaphore(%23 : memref<!tpu.dma_semaphore, #tpu.memory_space<semaphore_mem>>)
    %24 = arith.index_cast %5 : i32 to index
    %c3 = arith.constant 3 : index
    %25 = memref.load %arg1[%24, %c3] : memref<2x4xi32, #tpu.memory_space<smem>>
    %c0_i32_13 = arith.constant 0 : i32
    %c3_i32 = arith.constant 3 : i32
    %c0_i32_14 = arith.constant 0 : i32
    %26 = tpu.memref_slice %arg3[%5, %c0_i32_14, %25] : memref<2x64x128xf32, #tpu.memory_space<any>> -> memref<1x64x10xf32, #tpu.memory_space<any>>
    %27 = tpu.memref_squeeze %26 : memref<1x64x10xf32, #tpu.memory_space<any>> -> memref<64x10xf32, #tpu.memory_space<any>>
    %28 = tpu.memref_slice %arg6[%c0_i32_13, %c3_i32] : memref<1x4x!tpu.dma_semaphore, #tpu.memory_space<semaphore_mem>> -> memref<1x1x!tpu.dma_semaphore, #tpu.memory_space<semaphore_mem>>
    %29 = tpu.memref_squeeze %28 : memref<1x1x!tpu.dma_semaphore, #tpu.memory_space<semaphore_mem>> -> memref<!tpu.dma_semaphore, #tpu.memory_space<semaphore_mem>>
    tpu.enqueue_dma source(%arg5 : memref<64x10xf32, #tpu.memory_space<vmem>>) target(%27 : memref<64x10xf32, #tpu.memory_space<any>>) target_semaphore(%29 : memref<!tpu.dma_semaphore, #tpu.memory_space<semaphore_mem>>)
    %c0_i32_15 = arith.constant 0 : i32
    %c0_i32_16 = arith.constant 0 : i32
    %c0_i32_17 = arith.constant 0 : i32
    %30 = tpu.memref_slice %arg3[%5, %7, %c0_i32_17] : memref<2x64x128xf32, #tpu.memory_space<any>> -> memref<1x10x128xf32, #tpu.memory_space<any>>
    %31 = tpu.memref_squeeze %30 : memref<1x10x128xf32, #tpu.memory_space<any>> -> memref<10x128xf32, #tpu.memory_space<any>>
    %32 = tpu.memref_slice %arg6[%c0_i32_15, %c0_i32_16] : memref<1x4x!tpu.dma_semaphore, #tpu.memory_space<semaphore_mem>> -> memref<1x1x!tpu.dma_semaphore, #tpu.memory_space<semaphore_mem>>
    %33 = tpu.memref_squeeze %32 : memref<1x1x!tpu.dma_semaphore, #tpu.memory_space<semaphore_mem>> -> memref<!tpu.dma_semaphore, #tpu.memory_space<semaphore_mem>>
    tpu.wait_dma2 semaphore(%33 : memref<!tpu.dma_semaphore, #tpu.memory_space<semaphore_mem>>) src(%arg4 : memref<10x128xf32, #tpu.memory_space<vmem>>) dst(%31 : memref<10x128xf32, #tpu.memory_space<any>>)
    %c0_i32_18 = arith.constant 0 : i32
    %c1_i32_19 = arith.constant 1 : i32
    %c0_i32_20 = arith.constant 0 : i32
    %34 = tpu.memref_slice %arg3[%5, %13, %c0_i32_20] : memref<2x64x128xf32, #tpu.memory_space<any>> -> memref<1x10x128xf32, #tpu.memory_space<any>>
    %35 = tpu.memref_squeeze %34 : memref<1x10x128xf32, #tpu.memory_space<any>> -> memref<10x128xf32, #tpu.memory_space<any>>
    %36 = tpu.memref_slice %arg6[%c0_i32_18, %c1_i32_19] : memref<1x4x!tpu.dma_semaphore, #tpu.memory_space<semaphore_mem>> -> memref<1x1x!tpu.dma_semaphore, #tpu.memory_space<semaphore_mem>>
    %37 = tpu.memref_squeeze %36 : memref<1x1x!tpu.dma_semaphore, #tpu.memory_space<semaphore_mem>> -> memref<!tpu.dma_semaphore, #tpu.memory_space<semaphore_mem>>
    tpu.wait_dma2 semaphore(%37 : memref<!tpu.dma_semaphore, #tpu.memory_space<semaphore_mem>>) src(%arg4 : memref<10x128xf32, #tpu.memory_space<vmem>>) dst(%35 : memref<10x128xf32, #tpu.memory_space<any>>)
    %c0_i32_21 = arith.constant 0 : i32
    %c2_i32_22 = arith.constant 2 : i32
    %c0_i32_23 = arith.constant 0 : i32
    %38 = tpu.memref_slice %arg3[%5, %c0_i32_23, %19] : memref<2x64x128xf32, #tpu.memory_space<any>> -> memref<1x64x10xf32, #tpu.memory_space<any>>
    %39 = tpu.memref_squeeze %38 : memref<1x64x10xf32, #tpu.memory_space<any>> -> memref<64x10xf32, #tpu.memory_space<any>>
    %40 = tpu.memref_slice %arg6[%c0_i32_21, %c2_i32_22] : memref<1x4x!tpu.dma_semaphore, #tpu.memory_space<semaphore_mem>> -> memref<1x1x!tpu.dma_semaphore, #tpu.memory_space<semaphore_mem>>
    %41 = tpu.memref_squeeze %40 : memref<1x1x!tpu.dma_semaphore, #tpu.memory_space<semaphore_mem>> -> memref<!tpu.dma_semaphore, #tpu.memory_space<semaphore_mem>>
    tpu.wait_dma2 semaphore(%41 : memref<!tpu.dma_semaphore, #tpu.memory_space<semaphore_mem>>) src(%arg5 : memref<64x10xf32, #tpu.memory_space<vmem>>) dst(%39 : memref<64x10xf32, #tpu.memory_space<any>>)
    %c0_i32_24 = arith.constant 0 : i32
    %c3_i32_25 = arith.constant 3 : i32
    %c0_i32_26 = arith.constant 0 : i32
    %42 = tpu.memref_slice %arg3[%5, %c0_i32_26, %25] : memref<2x64x128xf32, #tpu.memory_space<any>> -> memref<1x64x10xf32, #tpu.memory_space<any>>
    %43 = tpu.memref_squeeze %42 : memref<1x64x10xf32, #tpu.memory_space<any>> -> memref<64x10xf32, #tpu.memory_space<any>>
    %44 = tpu.memref_slice %arg6[%c0_i32_24, %c3_i32_25] : memref<1x4x!tpu.dma_semaphore, #tpu.memory_space<semaphore_mem>> -> memref<1x1x!tpu.dma_semaphore, #tpu.memory_space<semaphore_mem>>
    %45 = tpu.memref_squeeze %44 : memref<1x1x!tpu.dma_semaphore, #tpu.memory_space<semaphore_mem>> -> memref<!tpu.dma_semaphore, #tpu.memory_space<semaphore_mem>>
    tpu.wait_dma2 semaphore(%45 : memref<!tpu.dma_semaphore, #tpu.memory_space<semaphore_mem>>) src(%arg5 : memref<64x10xf32, #tpu.memory_space<vmem>>) dst(%43 : memref<64x10xf32, #tpu.memory_space<any>>)
    return
  }
}

module attributes {stable_mosaic.version = 11 : i64} {
  func.func @_stream_kernel(%arg0: i32, %arg1: i32, %arg2: memref<2x4xi32, #tpu.memory_space<smem>>, %arg3: memref<1x64x128xf32, #tpu.memory_space<vmem>>, %arg4: memref<1x64x128xf32, #tpu.memory_space<vmem>>) attributes {dimension_semantics = [#tpu.dimension_semantics<parallel>, #tpu.dimension_semantics<parallel>], iteration_bounds = array<i64: 2, 1>, scalar_prefetch = 1 : i64, scratch_operands = 0 : i64, tpu.core_type = #tpu.core_type<tc>, window_params = [{transform_indices = @transform_0, window_bounds = array<i64: 1, 64, 128>}, {transform_indices = @transform_1, window_bounds = array<i64: 1, 64, 128>}]} {
    %c128_i32 = arith.constant 128 : i32
    %0 = arith.muli %arg1, %c128_i32 : i32
    %1 = tpu.iota {dimensions = array<i32: 0>} : vector<64x1xi32>
    %2 = tpu.iota {dimensions = array<i32: 1>} : vector<1x128xi32>
    %3 = vector.broadcast %0 : i32 to vector<1x128xi32>
    %4 = arith.addi %2, %3 : vector<1x128xi32>
    %c1_i32 = arith.constant 1 : i32
    %5 = arith.muli %arg0, %c1_i32 : i32
    %c0_i32 = arith.constant 0 : i32
    %6 = arith.addi %5, %c0_i32 : i32
    %7 = arith.index_cast %6 : i32 to index
    %c0 = arith.constant 0 : index
    %8 = memref.load %arg2[%7, %c0] : memref<2x4xi32, #tpu.memory_space<smem>>
    %9 = vector.broadcast %8 : i32 to vector<64x1xi32>
    %10 = arith.subi %1, %9 : vector<64x1xi32>
    %c10_i32 = arith.constant 10 : i32
    %11 = vector.broadcast %c10_i32 : i32 to vector<64x1xi32>
    %12 = arith.cmpi ult, %10, %11 : vector<64x1xi32>
    %13 = arith.index_cast %6 : i32 to index
    %c1 = arith.constant 1 : index
    %14 = memref.load %arg2[%13, %c1] : memref<2x4xi32, #tpu.memory_space<smem>>
    %15 = vector.broadcast %14 : i32 to vector<64x1xi32>
    %16 = arith.subi %1, %15 : vector<64x1xi32>
    %c10_i32_0 = arith.constant 10 : i32
    %17 = vector.broadcast %c10_i32_0 : i32 to vector<64x1xi32>
    %18 = arith.cmpi ult, %16, %17 : vector<64x1xi32>
    %19 = arith.ori %12, %18 : vector<64x1xi1>
    %20 = arith.index_cast %6 : i32 to index
    %c2 = arith.constant 2 : index
    %21 = memref.load %arg2[%20, %c2] : memref<2x4xi32, #tpu.memory_space<smem>>
    %22 = vector.broadcast %21 : i32 to vector<1x128xi32>
    %23 = arith.subi %4, %22 : vector<1x128xi32>
    %c10_i32_1 = arith.constant 10 : i32
    %24 = vector.broadcast %c10_i32_1 : i32 to vector<1x128xi32>
    %25 = arith.cmpi ult, %23, %24 : vector<1x128xi32>
    %26 = arith.index_cast %6 : i32 to index
    %c3 = arith.constant 3 : index
    %27 = memref.load %arg2[%26, %c3] : memref<2x4xi32, #tpu.memory_space<smem>>
    %28 = vector.broadcast %27 : i32 to vector<1x128xi32>
    %29 = arith.subi %4, %28 : vector<1x128xi32>
    %c10_i32_2 = arith.constant 10 : i32
    %30 = vector.broadcast %c10_i32_2 : i32 to vector<1x128xi32>
    %31 = arith.cmpi ult, %29, %30 : vector<1x128xi32>
    %32 = arith.ori %25, %31 : vector<1x128xi1>
    %33 = vector.broadcast %19 : vector<64x1xi1> to vector<64x128xi1>
    %34 = vector.broadcast %32 : vector<1x128xi1> to vector<64x128xi1>
    %35 = arith.ori %33, %34 : vector<64x128xi1>
    %c0_3 = arith.constant 0 : index
    %c0_4 = arith.constant 0 : index
    %c0_5 = arith.constant 0 : index
    %36 = vector.load %arg3[%c0_3, %c0_4, %c0_5] : memref<1x64x128xf32, #tpu.memory_space<vmem>>, vector<1x64x128xf32>
    %37 = vector.shape_cast %36 : vector<1x64x128xf32> to vector<64x128xf32>
    %cst = arith.constant 0.000000e+00 : f32
    %38 = vector.broadcast %cst : f32 to vector<64x128xf32>
    %39 = arith.select %35, %38, %37 : vector<64x128xi1>, vector<64x128xf32>
    %c0_6 = arith.constant 0 : index
    %c0_7 = arith.constant 0 : index
    %c0_8 = arith.constant 0 : index
    %40 = vector.load %arg4[%c0_6, %c0_7, %c0_8] : memref<1x64x128xf32, #tpu.memory_space<vmem>>, vector<1x64x128xf32>
    %41 = vector.shape_cast %40 : vector<1x64x128xf32> to vector<64x128xf32>
    %42 = vector.shape_cast %39 : vector<64x128xf32> to vector<1x64x128xf32>
    tpu.vector_store %arg4[%c0_6, %c0_7, %c0_8], %42 {strides = array<i32>} : memref<1x64x128xf32, #tpu.memory_space<vmem>>, vector<1x64x128xf32>,
    return
  }
  func.func @transform_0(%arg0: i32, %arg1: i32, %arg2: memref<2x4xi32, #tpu.memory_space<smem>>) -> (i32, i32, i32) {
    %c0_i32 = arith.constant 0 : i32
    %c0_i32_0 = arith.constant 0 : i32
    return %arg0, %c0_i32, %arg1 : i32, i32, i32
  }
  func.func @transform_1(%arg0: i32, %arg1: i32, %arg2: memref<2x4xi32, #tpu.memory_space<smem>>) -> (i32, i32, i32) {
    %c0_i32 = arith.constant 0 : i32
    %c0_i32_0 = arith.constant 0 : i32
    return %arg0, %c0_i32, %arg1 : i32, i32, i32
  }
}

</mosaic_0001>

<llo_original>
// kernel: tpu_custom_call.1
$region0: #{tpu_custom_call.1}
  #allocation0 [shape = 'u32[]', space=smem, size = 0x4, offset = 0x4, fixed_abs, tag = 'smem constant byte address 0x4 - core index']
  #allocation1 [shape = 'u32[144,128]{1,0:T(1,128)}', space=vmem, size = 0x12000, scoped, tag = 'internal scratch']
  #allocation2 [shape = 's32[1]{0}', space=sflag, size = 0x4, scoped, tag = 'scoped memory for tpu_custom_call.1']
  #allocation3 [shape = 'u8[1024]{0}', space=smem, size = 0x400, scoped, tag = 'prefetched SMEM operand 0']
  %s0 = inlined_call_operand.hbm [shape: s32[2,4], index: 0, kind: input, shape index: {}]
  %s1 = inlined_call_operand.hbm [shape: f32[2,64,128], index: 1, kind: input, shape index: {}]
  %s2 = inlined_call_operand.hbm [shape: f32[2,64,128], index: 2, kind: output, shape index: {}]
  %s3 = sld [smem:[#allocation0]]
  $region41: #{tpu_custom_call.1} parent=0
    _
  %s5 = ssub.s32 1, %s3
  %s6 = scalar_select 0, %s5, %s3
  %8 = dma.hbm_to_smem %s0, 32, [#allocation3], [#allocation2]
  %9 = dma.done [#allocation2], 32
  %10 = sfence
  $region1: #{tpu_custom_call.1} parent=0
    #allocation4 [shape = 'u8[65536]{0}', space=vmem, size = 0x10000, scoped, tag = 'input window, operand 1']
    #allocation5 [shape = 's32[2]{0}', space=sflag, size = 0x8, scoped, tag = 'scoped memory for tpu_custom_call.1']
    #allocation6 [shape = 's32[2]{0}', space=sflag, size = 0x8, scoped, tag = 'scoped memory for tpu_custom_call.1']
    #allocation7 [shape = 'u8[65536]{0}', space=vmem, size = 0x10000, scoped, tag = 'output window, operand 0']
    %11 = vsyncpa [#allocation5], 0
    %s12 = scalar_lea.sflag [#allocation5], 1
    %13 = vsyncpa %s12, 0
    %14 = vsyncpa [#allocation6], 0
    %s15 = scalar_lea.sflag [#allocation6], 1
    %16 = vsyncpa %s15, 0
    loop: start=0, step=1, limit=4
    $region2: #{tpu_custom_call.1} parent=1 // loop_pre_header
      _
    $region3: #{tpu_custom_call.1} parent=1 // loop_header
      %s18 = sphi 0, %s22
      %p19 = scmp.ge.s32.totalorder %s18, 4
      %s25 = sphi 0, %s37
      %s26 = sphi 0, %s33
      %s27 = sphi 0, %s25
      %s28 = sphi 0, %s26
      %s29 = sphi 0, %s27
      %s30 = sphi 0, %s28
      %s42 = sphi 0, %s44
      %s45 = sphi 0, %s42
      %s46 = sphi 0, %s45
      %s62 = sphi 0, %s46
      %s70 = sphi 0, %s72
      %s73 = sphi 0, %s70
      %s74 = sphi 0, %s73
      %s90 = sphi 0, %s74
    $region4: #{tpu_custom_call.1} parent=1 // loop_header_branch
      %21 = sbr.rel (%p19) target = $region8
    $region5: #{tpu_custom_call.1} parent=1 // loop_body
      %s23 = ssub.s32 %s18, 1
      %s24 = ssub.s32 %s18, 2
      %s31 = sadd.s32 1, %s26
      %p32 = scmp.ge.s32.totalorder %s31, 1
      %s33 = scalar_select %p32, 0, %s31
      %s34 = sadd.s32 1, %s25
      %s35 = scalar_select %p32, %s34, %s25
      %p36 = scmp.ge.s32.totalorder %s35, 2
      %s37 = scalar_select %p36, 0, %s35
      %s38 = ssub.s32 %s25, %s37
      %s39 = ssub.s32 %s26, %s33
      %s40 = sor.u32 %s38, %s39
      %p41 = scmp.eq.s32.totalorder %s40, 0
      %s43 = sadd.s32 %s42, 1
      %s44 = scalar_select %p41, %s42, %s43
      %p47 = pneg %p41
      %p48 = scmp.eq.s32.totalorder %s18, 1
      %p49 = por %p47, %p48
      %p50 = scmp.ne.s32.totalorder %s42, %s45
      %p51 = scmp.eq.s32.totalorder %s18, 0
      %p52 = por %p50, %p51
      %p53 = scmp.ne.s32.totalorder %s42, %s45
      %p54 = scmp.eq.s32.totalorder %s23, 1
      %p55 = por %p53, %p54
      %p56 = scmp.ne.s32.totalorder %s45, %s46
      %p57 = scmp.eq.s32.totalorder %s23, 0
      %p58 = por %p56, %p57
      %p59 = scmp.ne.s32.totalorder %s45, %s46
      %p60 = scmp.eq.s32.totalorder %s24, 1
      %p61 = por %p59, %p60
      %p63 = scmp.ne.s32.totalorder %s46, %s62
      %p64 = scmp.eq.s32.totalorder %s24, 0
      %p65 = por %p63, %p64
      %s66 = ssub.s32 %s25, %s37
      %s67 = ssub.s32 %s26, %s33
      %s68 = sor.u32 %s66, %s67
      %p69 = scmp.eq.s32.totalorder %s68, 0
      %s71 = sadd.s32 %s70, 1
      %s72 = scalar_select %p69, %s70, %s71
      %p75 = pneg %p69
      %p76 = scmp.eq.s32.totalorder %s18, 1
      %p77 = por %p75, %p76
      %p78 = scmp.ne.s32.totalorder %s70, %s73
      %p79 = scmp.eq.s32.totalorder %s18, 0
      %p80 = por %p78, %p79
      %p81 = scmp.ne.s32.totalorder %s70, %s73
      %p82 = scmp.eq.s32.totalorder %s23, 1
      %p83 = por %p81, %p82
      %p84 = scmp.ne.s32.totalorder %s73, %s74
      %p85 = scmp.eq.s32.totalorder %s23, 0
      %p86 = por %p84, %p85
      %p87 = scmp.ne.s32.totalorder %s73, %s74
      %p88 = scmp.eq.s32.totalorder %s24, 1
      %p89 = por %p87, %p88
      %p91 = scmp.ne.s32.totalorder %s74, %s90
      %p92 = scmp.eq.s32.totalorder %s24, 0
      %p93 = por %p91, %p92
      %p94 = scmp.le.s32.totalorder 1, %s18
      %p95 = scmp.lt.s32.totalorder %s18, 3
      %p96 = pnand %p94, %p95
      %p97 = pneg %p96
      // Predicated region
      $region9: #{tpu_custom_call.1} parent=5 // pred_check
        _
      $region10: #{tpu_custom_call.1} parent=5 // pred_check_branch
        %99 = sbr.rel (%p96) target = $region12
      $region11: #{tpu_custom_call.1} parent=5 // pred_region
        %s100 = ssub.s32 %s18, 1
      $region12: #{tpu_custom_call.1} parent=5 // pred_fallthru
        _
      %p101 = scmp.lt.s32.totalorder %s18, 2
      // Predicated region
      $region13: #{tpu_custom_call.1} parent=5 // pred_check
        %p102 = pneg %p101
      $region14: #{tpu_custom_call.1} parent=5 // pred_check_branch
        %104 = sbr.rel (%p102) target = $region16
      $region15: #{tpu_custom_call.1} parent=5 // pred_region
        // Predicated region
        $region17: #{tpu_custom_call.1} parent=15 // pred_check
          %p105 = pneg %p52
        $region18: #{tpu_custom_call.1} parent=15 // pred_check_branch
          %107 = sbr.rel (%p105) target = $region20
        $region19: #{tpu_custom_call.1} parent=15 // pred_region
          %s108 = sand.u32 %s42, 1
          %s109 = scalar_lea.sflag [#allocation5], %s108
          %s110 = sand.u32 %s42, 1
          %s111 = smul.addr %s110, 64
          %s112 = scalar_lea.vmem [#allocation4], %s111
          %s114 = ssub.s32 1024, 1024
          %115 = vsyncadd %s109, %s114
          %s116 = smul.addr %s25, 8
          %s117 = sadd.s32 %s26, %s116
          %s118 = smul.addr %s117, 128
          %s119 = scalar_lea.hbm %s1, %s118
          %s120 = sshll.u32 %s112, 4
          %s121 = int_to_ptr.vmem [resolvable:$true] %s120
          %126 = dma.hbm_to_vmem [thread:$0]  %s119, 1024, %s121, %s109, 128, 128, 8
        $region20: #{tpu_custom_call.1} parent=15 // pred_fallthru
          _
      $region16: #{tpu_custom_call.1} parent=5 // pred_fallthru
        _
      %p127 = scmp.le.s32.totalorder 1, %s18
      %p128 = scmp.lt.s32.totalorder %s18, 3
      %p129 = pnand %p127, %p128
      %p130 = pneg %p129
      // Predicated region
      $region21: #{tpu_custom_call.1} parent=5 // pred_check
        _
      $region22: #{tpu_custom_call.1} parent=5 // pred_check_branch
        %132 = sbr.rel (%p129) target = $region24
      $region23: #{tpu_custom_call.1} parent=5 // pred_region
        %s133 = ssub.s32 %s18, 1
        %s134 = sand.u32 %s45, 1
        %s135 = scalar_lea.sflag [#allocation5], %s134
        %s136 = sand.u32 %s45, 1
        %s137 = smul.addr %s136, 64
        %s138 = scalar_lea.vmem [#allocation4], %s137
        // Predicated region
        $region25: #{tpu_custom_call.1} parent=23 // pred_check
          %p139 = pneg %p58
        $region26: #{tpu_custom_call.1} parent=23 // pred_check_branch
          %141 = sbr.rel (%p139) target = $region28
        $region27: #{tpu_custom_call.1} parent=23 // pred_region
          %142 = dma.done %s135, 1024
        $region28: #{tpu_custom_call.1} parent=23 // pred_fallthru
          _
        %s143 = sand.u32 %s45, 1
        %s144 = scalar_lea.sflag [#allocation5], %s143
        %s145 = sand.u32 %s45, 1
        %s146 = smul.addr %s145, 64
        %s147 = scalar_lea.vmem [#allocation4], %s146
        %p148 = pneg %p58
        %p149 = pneg %p55
        %p150 = pneg %p86
        %p151 = pneg %p83
        %s152 = sand.u32 %s73, 1
        %s153 = scalar_lea.sflag [#allocation6], %s152
        %s154 = sand.u32 %s73, 1
        %s155 = smul.addr %s154, 64
        %s156 = scalar_lea.vmem [#allocation7], %s155
        %s157 = smul.u32 %s28, 128
        %v158 = vlaneseq
        %v159 = vshrl.u32 %v158, 7
        %v160 = vadd.s32 %v159, 8
        %v161 = vadd.s32 %v159, 16
        %v162 = vadd.s32 %v159, 24
        %v163 = vadd.s32 %v159, 32
        %v164 = vadd.s32 %v159, 40
        %v165 = vadd.s32 %v159, 48
        %v166 = vadd.s32 %v159, 56
        %v167 = vlaneseq
        %v168 = vand.u32 %v167, 127
        %v169 = vstv %s157
        %v170 = vadd.s32 %v168, %v169
        %s171 = smul.u32 %s27, 128
        %s172 = sld [smem:[#allocation3 + %s171]]
        %v173 = vstv %s172
        %v174 = vsub.s32 %v159, %v173
        %v175 = vsub.s32 %v160, %v173
        %v176 = vsub.s32 %v161, %v173
        %v177 = vsub.s32 %v162, %v173
        %v178 = vsub.s32 %v163, %v173
        %v179 = vsub.s32 %v164, %v173
        %v180 = vsub.s32 %v165, %v173
        %v181 = vsub.s32 %v166, %v173
        %vm182 = vcmp.lt.u32.totalorder %v174, 10
        %vm183 = vcmp.lt.u32.totalorder %v175, 10
        %vm184 = vcmp.lt.u32.totalorder %v176, 10
        %vm185 = vcmp.lt.u32.totalorder %v177, 10
        %vm186 = vcmp.lt.u32.totalorder %v178, 10
        %vm187 = vcmp.lt.u32.totalorder %v179, 10
        %vm188 = vcmp.lt.u32.totalorder %v180, 10
        %vm189 = vcmp.lt.u32.totalorder %v181, 10
        %s190 = sadd.s32 %s171, 1
        %s191 = sld [smem:[#allocation3 + %s190]]
        %v192 = vstv %s191
        %v193 = vsub.s32 %v159, %v192
        %v194 = vsub.s32 %v160, %v192
        %v195 = vsub.s32 %v161, %v192
        %v196 = vsub.s32 %v162, %v192
        %v197 = vsub.s32 %v163, %v192
        %v198 = vsub.s32 %v164, %v192
        %v199 = vsub.s32 %v165, %v192
        %v200 = vsub.s32 %v166, %v192
        %vm201 = vcmp.lt.u32.totalorder %v193, 10
        %vm202 = vcmp.lt.u32.totalorder %v194, 10
        %vm203 = vcmp.lt.u32.totalorder %v195, 10
        %vm204 = vcmp.lt.u32.totalorder %v196, 10
        %vm205 = vcmp.lt.u32.totalorder %v197, 10
        %vm206 = vcmp.lt.u32.totalorder %v198, 10
        %vm207 = vcmp.lt.u32.totalorder %v199, 10
        %vm208 = vcmp.lt.u32.totalorder %v200, 10
        %vm209 = vmor %vm182, %vm201
        %vm210 = vmor %vm183, %vm202
        %vm211 = vmor %vm184, %vm203
        %vm212 = vmor %vm185, %vm204
        %vm213 = vmor %vm186, %vm205
        %vm214 = vmor %vm187, %vm206
        %vm215 = vmor %vm188, %vm207
        %vm216 = vmor %vm189, %vm208
        %s217 = sadd.s32 %s171, 2
        %s218 = sld [smem:[#allocation3 + %s217]]
        %v219 = vstv %s218
        %v220 = vsub.s32 %v170, %v219
        %vm221 = vcmp.lt.u32.totalorder %v220, 10
        %s222 = sadd.s32 %s171, 3
        %s223 = sld [smem:[#allocation3 + %s222]]
        %v224 = vstv %s223
        %v225 = vsub.s32 %v170, %v224
        %vm226 = vcmp.lt.u32.totalorder %v225, 10
        %vm227 = vmor %vm221, %vm226
        %v228 = vsel %vm209, 1, 0
        %v229 = vsel %vm210, 1, 0
        %v230 = vsel %vm211, 1, 0
        %v231 = vsel %vm212, 1, 0
        %v232 = vsel %vm213, 1, 0
        %v233 = vsel %vm214, 1, 0
        %v234 = vsel %vm215, 1, 0
        %v235 = vsel %vm216, 1, 0
        %vm236 = vcmp.eq.s32.totalorder %v228, 1
        %vm237 = vcmp.eq.s32.totalorder %v229, 1
        %vm238 = vcmp.eq.s32.totalorder %v230, 1
        %vm239 = vcmp.eq.s32.totalorder %v231, 1
        %vm240 = vcmp.eq.s32.totalorder %v232, 1
        %vm241 = vcmp.eq.s32.totalorder %v233, 1
        %vm242 = vcmp.eq.s32.totalorder %v234, 1
        %vm243 = vcmp.eq.s32.totalorder %v235, 1
        %v244 = vsel %vm227, 1, 0
        %vm245 = vcmp.eq.s32.totalorder %v244, 1
        %vm246 = vmor %vm236, %vm245
        %vm247 = vmor %vm237, %vm245
        %vm248 = vmor %vm238, %vm245
        %vm249 = vmor %vm239, %vm245
        %vm250 = vmor %vm240, %vm245
        %vm251 = vmor %vm241, %vm245
        %vm252 = vmor %vm242, %vm245
        %vm253 = vmor %vm243, %vm245
        %v254 = vld [vmem:[%s138] sm:$0xff]
        %v255 = vld [vmem:[%s138 + $0x8] sm:$0xff]
        %v256 = vld [vmem:[%s138 + $0x10] sm:$0xff]
        %v257 = vld [vmem:[%s138 + $0x18] sm:$0xff]
        %v258 = vld [vmem:[%s138 + $0x20] sm:$0xff]
        %v259 = vld [vmem:[%s138 + $0x28] sm:$0xff]
        %v260 = vld [vmem:[%s138 + $0x30] sm:$0xff]
        %v261 = vld [vmem:[%s138 + $0x38] sm:$0xff]
        %v262 = vsel %vm246, 0.0, %v254
        %v263 = vsel %vm247, 0.0, %v255
        %v264 = vsel %vm248, 0.0, %v256
        %v265 = vsel %vm249, 0.0, %v257
        %v266 = vsel %vm250, 0.0, %v258
        %v267 = vsel %vm251, 0.0, %v259
        %v268 = vsel %vm252, 0.0, %v260
        %v269 = vsel %vm253, 0.0, %v261
        %270 = vst [vmem:[%s156] sm:$0xff] %v262
        %271 = vst [vmem:[%s156 + $0x8] sm:$0xff] %v263
        %272 = vst [vmem:[%s156 + $0x10] sm:$0xff] %v264
        %273 = vst [vmem:[%s156 + $0x18] sm:$0xff] %v265
        %274 = vst [vmem:[%s156 + $0x20] sm:$0xff] %v266
        %275 = vst [vmem:[%s156 + $0x28] sm:$0xff] %v267
        %276 = vst [vmem:[%s156 + $0x30] sm:$0xff] %v268
        %277 = vst [vmem:[%s156 + $0x38] sm:$0xff] %v269
        %s278 = sand.u32 %s73, 1
        %s279 = scalar_lea.sflag [#allocation6], %s278
        %s280 = sand.u32 %s73, 1
        %s281 = smul.addr %s280, 64
        %s282 = scalar_lea.vmem [#allocation7], %s281
        // Predicated region
        $region29: #{tpu_custom_call.1} parent=23 // pred_check
          %p283 = pneg %p83
        $region30: #{tpu_custom_call.1} parent=23 // pred_check_branch
          %285 = sbr.rel (%p283) target = $region32
        $region31: #{tpu_custom_call.1} parent=23 // pred_region
          %s287 = ssub.s32 1024, 1024
          %288 = vsyncadd %s279, %s287
          %s289 = smul.addr %s27, 8
          %s290 = sadd.s32 %s28, %s289
          %s291 = smul.addr %s290, 128
          %s292 = scalar_lea.hbm %s2, %s291
          %s293 = sshll.u32 %s282, 4
          %s294 = int_to_ptr.vmem [resolvable:$true] %s293
          %299 = dma.vmem_to_hbm [thread:$0]  %s294, 1024, %s292, %s279, 128, 128, 8
        $region32: #{tpu_custom_call.1} parent=23 // pred_fallthru
          _
      $region24: #{tpu_custom_call.1} parent=5 // pred_fallthru
        _
      %p300 = scmp.le.s32.totalorder 2, %s18
      // Predicated region
      $region33: #{tpu_custom_call.1} parent=5 // pred_check
        %p301 = pneg %p300
      $region34: #{tpu_custom_call.1} parent=5 // pred_check_branch
        %303 = sbr.rel (%p301) target = $region36
      $region35: #{tpu_custom_call.1} parent=5 // pred_region
        %s304 = ssub.s32 %s18, 2
        // Predicated region
        $region37: #{tpu_custom_call.1} parent=35 // pred_check
          %p305 = pneg %p89
        $region38: #{tpu_custom_call.1} parent=35 // pred_check_branch
          %307 = sbr.rel (%p305) target = $region40
        $region39: #{tpu_custom_call.1} parent=35 // pred_region
          %s308 = sand.u32 %s74, 1
          %s309 = scalar_lea.sflag [#allocation6], %s308
          %s310 = sand.u32 %s74, 1
          %s311 = smul.addr %s310, 64
          %s312 = scalar_lea.vmem [#allocation7], %s311
          %313 = dma.done %s309, 1024
        $region40: #{tpu_custom_call.1} parent=35 // pred_fallthru
          _
      $region36: #{tpu_custom_call.1} parent=5 // pred_fallthru
        _
    $region6: #{tpu_custom_call.1} parent=1 // loop_footer
      %s22 = sadd.s32 1, %s18
    $region7: #{tpu_custom_call.1} parent=1 // loop_footer_branch
      %17 = sbr.rel target = $region3
    $region8: #{tpu_custom_call.1} parent=1 // loop_exit
      _
    %314 = vsyncpa [#allocation5], 1
    %s315 = scalar_lea.sflag [#allocation5], 1
    %316 = vsyncpa %s315, 1
    %317 = vsyncpa [#allocation6], 1
    %s318 = scalar_lea.sflag [#allocation6], 1
    %319 = vsyncpa %s318, 1

</llo_original>
